<compile_context>
chip_gen: v7x
topology: tpu7x:2x2x1
jax: 0.10.0
libtpu: 0.0.40
codegen_flags: <defaults>
</compile_context>

<pallas_src>
import jax
import jax.numpy as jnp
from jax.experimental import pallas as pl
from jax.experimental.pallas import tpu as pltpu

# Logical sizes implied by the PyTorch script.
K = 3
N = 30
BATCH = N * K          # 90
IN_DIM = 2
HID_DIM = 100
OUT_DIM = 3

# Lane-dense padded feature widths (applied once to the parameters).
PH = 128               # padded hidden features
PO = 128               # padded output features (unmasked vst on all gens)


def _mlp_kernel(z_ref, w1_ref, b1_ref, w2_ref, b2_ref, o_ref):
    # ---- Layer 1: contraction dim is only 2 -> two VPU broadcast-FMAs ----
    z = z_ref[...]                                    # (B, 2)
    h = (z[:, 0:1] * w1_ref[0:1, :]                   # (B,1)*(1,PH) -> (B,PH)
         + z[:, 1:2] * w1_ref[1:2, :]
         + b1_ref[...])                               # + (1,PH) broadcast
    h = jnp.maximum(h, 0.0)                           # ReLU (VPU)
    # ---- Layer 2: (B,PH) @ (PH,PO) on the MXU ----
    o = jnp.dot(h, w2_ref[...], preferred_element_type=jnp.float32)
    o_ref[...] = o + b2_ref[...]                      # + (1,PO) broadcast


@jax.jit
def mlp_forward(z, w1_p, b1_p, w2_p, b2_p):
    """z: (batch, 2) f32; params pre-padded by prepare_params.
    Returns (batch, 3) f32, matching Net.forward."""
    batch = z.shape[0]
    vmem = pl.BlockSpec(memory_space=pltpu.MemorySpace.VMEM)
    out_p = pl.pallas_call(
        _mlp_kernel,
        out_shape=jax.ShapeDtypeStruct((batch, PO), jnp.float32),
        in_specs=[vmem, vmem, vmem, vmem, vmem],
        out_specs=vmem,
    )(z, w1_p, b1_p, w2_p, b2_p)
    return out_p[:, :OUT_DIM]


def prepare_params(w1, b1, w2, b2):
    """One-time zero-padding of the parameters to lane-dense kernel shapes."""
    w1_p = jnp.zeros((IN_DIM, PH), jnp.float32).at[:, :HID_DIM].set(w1)
    b1_p = jnp.zeros((1, PH), jnp.float32).at[0, :HID_DIM].set(b1)
    w2_p = jnp.zeros((PH, PO), jnp.float32).at[:HID_DIM, :OUT_DIM].set(w2)
    b2_p = jnp.zeros((1, PO), jnp.float32).at[0, :OUT_DIM].set(b2)
    return w1_p, b1_p, w2_p, b2_p


def init_params(key):
    """Deterministic init mimicking torch.nn.Linear default (U[-1/sqrt(fan_in), +])."""
    k1, k2, k3, k4 = jax.random.split(key, 4)
    bound1 = 1.0 / jnp.sqrt(jnp.float32(IN_DIM))
    bound2 = 1.0 / jnp.sqrt(jnp.float32(HID_DIM))
    # Stored as (in_features, out_features) for the z @ W convention.
    w1 = jax.random.uniform(k1, (IN_DIM, HID_DIM), jnp.float32, -bound1, bound1)
    b1 = jax.random.uniform(k2, (HID_DIM,), jnp.float32, -bound1, bound1)
    w2 = jax.random.uniform(k3, (HID_DIM, OUT_DIM), jnp.float32, -bound2, bound2)
    b2 = jax.random.uniform(k4, (OUT_DIM,), jnp.float32, -bound2, bound2)
    return w1, b1, w2, b2


if __name__ == "__main__":
    key = jax.random.PRNGKey(0)
    k_in, k_par = jax.random.split(key)

    # Example input consistent with the script: z has last dim 2 (stacked x, y).
    z = jax.random.normal(k_in, (BATCH, IN_DIM), jnp.float32)

    w1, b1, w2, b2 = init_params(k_par)
    w1_p, b1_p, w2_p, b2_p = prepare_params(w1, b1, w2, b2)   # once, not per call

    out = mlp_forward(z, w1_p, b1_p, w2_p, b2_p)
    out = jax.block_until_ready(out)

    # Sanity check vs. pure-JAX reference.
    ref = jnp.maximum(z @ w1 + b1, 0.0) @ w2 + b2
    assert out.shape == (BATCH, OUT_DIM)
    assert jnp.allclose(out, ref, atol=1e-5, rtol=1e-5)

    print("KERNEL_OK")
</pallas_src>

<mosaic_0001>
module attributes {stable_mosaic.version = 11 : i64} {
  func.func @_mlp_kernel(%arg0: memref<90x2xf32, #tpu.memory_space<vmem>>, %arg1: memref<2x128xf32, #tpu.memory_space<vmem>>, %arg2: memref<1x128xf32, #tpu.memory_space<vmem>>, %arg3: memref<128x128xf32, #tpu.memory_space<vmem>>, %arg4: memref<1x128xf32, #tpu.memory_space<vmem>>, %arg5: memref<90x128xf32, #tpu.memory_space<vmem>>) attributes {dimension_semantics = [], scalar_prefetch = 0 : i64, scratch_operands = 0 : i64, tpu.core_type = #tpu.core_type<tc>} {
    %c0 = arith.constant 0 : index
    %c0_0 = arith.constant 0 : index
    %0 = vector.load %arg0[%c0, %c0_0] : memref<90x2xf32, #tpu.memory_space<vmem>>, vector<90x2xf32>
    %1 = vector.extract_strided_slice %0 {offsets = [0, 0], sizes = [90, 1], strides = [1, 1]} : vector<90x2xf32> to vector<90x1xf32>
    %c0_1 = arith.constant 0 : index
    %c0_2 = arith.constant 0 : index
    %2 = vector.load %arg1[%c0_1, %c0_2] : memref<2x128xf32, #tpu.memory_space<vmem>>, vector<1x128xf32>
    %3 = vector.broadcast %1 : vector<90x1xf32> to vector<90x128xf32>
    %4 = vector.broadcast %2 : vector<1x128xf32> to vector<90x128xf32>
    %5 = arith.mulf %3, %4 : vector<90x128xf32>
    %6 = vector.extract_strided_slice %0 {offsets = [0, 1], sizes = [90, 1], strides = [1, 1]} : vector<90x2xf32> to vector<90x1xf32>
    %c1 = arith.constant 1 : index
    %c0_3 = arith.constant 0 : index
    %7 = vector.load %arg1[%c1, %c0_3] : memref<2x128xf32, #tpu.memory_space<vmem>>, vector<1x128xf32>
    %8 = vector.broadcast %6 : vector<90x1xf32> to vector<90x128xf32>
    %9 = vector.broadcast %7 : vector<1x128xf32> to vector<90x128xf32>
    %10 = arith.mulf %8, %9 : vector<90x128xf32>
    %11 = arith.addf %5, %10 : vector<90x128xf32>
    %c0_4 = arith.constant 0 : index
    %c0_5 = arith.constant 0 : index
    %12 = vector.load %arg2[%c0_4, %c0_5] : memref<1x128xf32, #tpu.memory_space<vmem>>, vector<1x128xf32>
    %13 = vector.broadcast %12 : vector<1x128xf32> to vector<90x128xf32>
    %14 = arith.addf %11, %13 : vector<90x128xf32>
    %cst = arith.constant 0.000000e+00 : f32
    %15 = vector.broadcast %cst : f32 to vector<90x128xf32>
    %16 = arith.maximumf %14, %15 : vector<90x128xf32>
    %c0_6 = arith.constant 0 : index
    %c0_7 = arith.constant 0 : index
    %17 = vector.load %arg3[%c0_6, %c0_7] : memref<128x128xf32, #tpu.memory_space<vmem>>, vector<128x128xf32>
    %cst_8 = arith.constant dense<0.000000e+00> : vector<90x128xf32>
    %18 = tpu.matmul %16, %17, %cst_8 {dimension_numbers = #tpu.dot_dimension_numbers<[1], [0], [0], [1], [0, 0, 1, 1], [], []>} : vector<90x128xf32>, vector<128x128xf32>, vector<90x128xf32> -> vector<90x128xf32>
    %c0_9 = arith.constant 0 : index
    %c0_10 = arith.constant 0 : index
    %19 = vector.load %arg4[%c0_9, %c0_10] : memref<1x128xf32, #tpu.memory_space<vmem>>, vector<1x128xf32>
    %20 = vector.broadcast %19 : vector<1x128xf32> to vector<90x128xf32>
    %21 = arith.addf %18, %20 : vector<90x128xf32>
    %c0_11 = arith.constant 0 : index
    %c0_12 = arith.constant 0 : index
    %22 = vector.load %arg5[%c0_11, %c0_12] : memref<90x128xf32, #tpu.memory_space<vmem>>, vector<90x128xf32>
    tpu.vector_store %arg5[%c0_11, %c0_12], %21 {strides = array<i32>} : memref<90x128xf32, #tpu.memory_space<vmem>>, vector<90x128xf32>,
    return
  }
}

</mosaic_0001>

<llo_original>
// kernel: mlp_forward.1
$region0: #{mlp_forward.1}
  #allocation0 [shape = 'u32[]', space=smem, size = 0x4, offset = 0x4, fixed_abs, tag = 'smem constant byte address 0x4 - core index']
  #allocation1 [shape = 'u32[144,128]{1,0:T(1,128)}', space=vmem, size = 0x12000, scoped, tag = 'internal scratch']
  %s0 = inlined_call_operand.vmem [shape: f32[90,2], index: 0, kind: input, shape index: {}]
  %s1 = inlined_call_operand.vmem [shape: f32[2,128], index: 1, kind: input, shape index: {}]
  %s2 = inlined_call_operand.vmem [shape: f32[1,128], index: 2, kind: input, shape index: {}]
  %s3 = inlined_call_operand.hbm [shape: f32[128,128], index: 3, kind: input, shape index: {}]
  %s4 = inlined_call_operand.vmem [shape: f32[1,128], index: 4, kind: input, shape index: {}]
  %s5 = inlined_call_operand.vmem [shape: f32[90,128], index: 5, kind: output, shape index: {}]
  %s6 = sld [smem:[#allocation0]]
  $region34: #{mlp_forward.1} parent=0
    _
  %s8 = ssub.s32 1, %s6
  %s9 = scalar_select 0, %s8, %s6
  $region1: #{mlp_forward.1} parent=0
    #allocation2 [shape = 'u8[65536]{0}', space=vmem, size = 0x10000, scoped, tag = 'input window, operand 3, single buffered']
    #allocation3 [shape = 's32[1]{0}', space=sflag, size = 0x4, scoped, tag = 'scoped memory for mlp_forward.1']
    %10 = vsyncpa [#allocation3], 0
    // Predicated region
    $region2: #{mlp_forward.1} parent=1 // pred_check
      _
    $region3: #{mlp_forward.1} parent=1 // pred_check_branch
      %12 = sbr.rel (0) target = $region5
    $region4: #{mlp_forward.1} parent=1 // pred_region
      _
    $region5: #{mlp_forward.1} parent=1 // pred_fallthru
      _
    // Predicated region
    $region6: #{mlp_forward.1} parent=1 // pred_check
      _
    $region7: #{mlp_forward.1} parent=1 // pred_check_branch
      %14 = sbr.rel (0) target = $region9
    $region8: #{mlp_forward.1} parent=1 // pred_region
      _
    $region9: #{mlp_forward.1} parent=1 // pred_fallthru
      _
    // Predicated region
    $region10: #{mlp_forward.1} parent=1 // pred_check
      _
    $region11: #{mlp_forward.1} parent=1 // pred_check_branch
      %16 = sbr.rel (0) target = $region13
    $region12: #{mlp_forward.1} parent=1 // pred_region
      _
    $region13: #{mlp_forward.1} parent=1 // pred_fallthru
      _
    // Predicated region
    $region14: #{mlp_forward.1} parent=1 // pred_check
      _
    $region15: #{mlp_forward.1} parent=1 // pred_check_branch
      %18 = sbr.rel (0) target = $region17
    $region16: #{mlp_forward.1} parent=1 // pred_region
      %s20 = ssub.s32 2048, 2048
      %21 = vsyncadd [#allocation3], %s20
      %s22 = sshll.u32 [#allocation2], 4
      %s23 = int_to_ptr.vmem [resolvable:$true] %s22
      %28 = dma.hbm_to_vmem [thread:$0]  %s3, 2048, %s23, [#allocation3], 128, 128, 8
    $region17: #{mlp_forward.1} parent=1 // pred_fallthru
      _
    // Predicated region
    $region18: #{mlp_forward.1} parent=1 // pred_check
      _
    $region19: #{mlp_forward.1} parent=1 // pred_check_branch
      %30 = sbr.rel (0) target = $region21
    $region20: #{mlp_forward.1} parent=1 // pred_region
      _
    $region21: #{mlp_forward.1} parent=1 // pred_fallthru
      _
    // Predicated region
    $region22: #{mlp_forward.1} parent=1 // pred_check
      _
    $region23: #{mlp_forward.1} parent=1 // pred_check_branch
      %32 = sbr.rel (0) target = $region25
    $region24: #{mlp_forward.1} parent=1 // pred_region
      %33 = dma.done [#allocation3], 2048
    $region25: #{mlp_forward.1} parent=1 // pred_fallthru
      _
    %v34 = vld [vmem:[%s0] sm:$0xff]
    %v35 = vld [vmem:[%s0 + $0x8] sm:$0xff]
    %v36 = vld [vmem:[%s0 + $0x10] sm:$0xff]
    %v37 = vld [vmem:[%s0 + $0x18] sm:$0xff]
    %v38 = vld [vmem:[%s0 + $0x20] sm:$0xff]
    %v39 = vld [vmem:[%s0 + $0x28] sm:$0xff]
    %v40 = vld [vmem:[%s0 + $0x30] sm:$0xff]
    %v41 = vld [vmem:[%s0 + $0x38] sm:$0xff]
    %v42 = vld [vmem:[%s0 + $0x40] sm:$0xff]
    %v43 = vld [vmem:[%s0 + $0x48] sm:$0xff]
    %v44 = vld [vmem:[%s0 + $0x50] sm:$0xff]
    %v45 = vld [vmem:[%s0 + $0x58] sm:$0x3]
    %v46 = vld [vmem:[%s1] sm:$0x1]
    %48 = vset.pattern.permute.xlu0 0
    %49 = vperm.xlu0 %48, %v34
    %v50 = vpop.permute.xlu0 %49
    %53 = vset.pattern.permute.xlu0 0
    %54 = vperm.xlu0 %53, %v35
    %v55 = vpop.permute.xlu0 %54
    %58 = vset.pattern.permute.xlu0 0
    %59 = vperm.xlu0 %58, %v36
    %v60 = vpop.permute.xlu0 %59
    %63 = vset.pattern.permute.xlu0 0
    %64 = vperm.xlu0 %63, %v37
    %v65 = vpop.permute.xlu0 %64
    %68 = vset.pattern.permute.xlu0 0
    %69 = vperm.xlu0 %68, %v38
    %v70 = vpop.permute.xlu0 %69
    %73 = vset.pattern.permute.xlu0 0
    %74 = vperm.xlu0 %73, %v39
    %v75 = vpop.permute.xlu0 %74
    %78 = vset.pattern.permute.xlu0 0
    %79 = vperm.xlu0 %78, %v40
    %v80 = vpop.permute.xlu0 %79
    %83 = vset.pattern.permute.xlu0 0
    %84 = vperm.xlu0 %83, %v41
    %v85 = vpop.permute.xlu0 %84
    %88 = vset.pattern.permute.xlu0 0
    %89 = vperm.xlu0 %88, %v42
    %v90 = vpop.permute.xlu0 %89
    %93 = vset.pattern.permute.xlu0 0
    %94 = vperm.xlu0 %93, %v43
    %v95 = vpop.permute.xlu0 %94
    %98 = vset.pattern.permute.xlu0 0
    %99 = vperm.xlu0 %98, %v44
    %v100 = vpop.permute.xlu0 %99
    %103 = vset.pattern.permute.xlu0 0
    %104 = vperm.xlu0 %103, %v45
    %v105 = vpop.permute.xlu0 %104
    %v107 = vlaneseq
    %v108 = vshrl.u32 %v107, 7
    %v109 = vsub.s32 0, %v108
    %v110 = vrot.slane %v46, %v109
    %v111 = vmul.f32 %v50, %v110
    %v112 = vmul.f32 %v55, %v110
    %v113 = vmul.f32 %v60, %v110
    %v114 = vmul.f32 %v65, %v110
    %v115 = vmul.f32 %v70, %v110
    %v116 = vmul.f32 %v75, %v110
    %v117 = vmul.f32 %v80, %v110
    %v118 = vmul.f32 %v85, %v110
    %v119 = vmul.f32 %v90, %v110
    %v120 = vmul.f32 %v95, %v110
    %v121 = vmul.f32 %v100, %v110
    %v122 = vmul.f32 %v105, %v110
    %v123 = vld [vmem:[%s1 + $0x1] sm:$0x1]
    %124 = vset.pattern.permute.xlu0 1
    %125 = vperm.xlu0 %124, %v34
    %v126 = vpop.permute.xlu0 %125
    %128 = vset.pattern.permute.xlu0 1
    %129 = vperm.xlu0 %128, %v35
    %v130 = vpop.permute.xlu0 %129
    %132 = vset.pattern.permute.xlu0 1
    %133 = vperm.xlu0 %132, %v36
    %v134 = vpop.permute.xlu0 %133
    %136 = vset.pattern.permute.xlu0 1
    %137 = vperm.xlu0 %136, %v37
    %v138 = vpop.permute.xlu0 %137
    %140 = vset.pattern.permute.xlu0 1
    %141 = vperm.xlu0 %140, %v38
    %v142 = vpop.permute.xlu0 %141
    %144 = vset.pattern.permute.xlu0 1
    %145 = vperm.xlu0 %144, %v39
    %v146 = vpop.permute.xlu0 %145
    %148 = vset.pattern.permute.xlu0 1
    %149 = vperm.xlu0 %148, %v40
    %v150 = vpop.permute.xlu0 %149
    %152 = vset.pattern.permute.xlu0 1
    %153 = vperm.xlu0 %152, %v41
    %v154 = vpop.permute.xlu0 %153
    %156 = vset.pattern.permute.xlu0 1
    %157 = vperm.xlu0 %156, %v42
    %v158 = vpop.permute.xlu0 %157
    %160 = vset.pattern.permute.xlu0 1
    %161 = vperm.xlu0 %160, %v43
    %v162 = vpop.permute.xlu0 %161
    %164 = vset.pattern.permute.xlu0 1
    %165 = vperm.xlu0 %164, %v44
    %v166 = vpop.permute.xlu0 %165
    %168 = vset.pattern.permute.xlu0 1
    %169 = vperm.xlu0 %168, %v45
    %v170 = vpop.permute.xlu0 %169
    %v172 = vlaneseq
    %v173 = vshrl.u32 %v172, 7
    %v174 = vsub.s32 0, %v173
    %v175 = vrot.slane %v123, %v174
    %v176 = vmul.f32 %v126, %v175
    %v177 = vmul.f32 %v130, %v175
    %v178 = vmul.f32 %v134, %v175
    %v179 = vmul.f32 %v138, %v175
    %v180 = vmul.f32 %v142, %v175
    %v181 = vmul.f32 %v146, %v175
    %v182 = vmul.f32 %v150, %v175
    %v183 = vmul.f32 %v154, %v175
    %v184 = vmul.f32 %v158, %v175
    %v185 = vmul.f32 %v162, %v175
    %v186 = vmul.f32 %v166, %v175
    %v187 = vmul.f32 %v170, %v175
    %v188 = vadd.f32 %v111, %v176
    %v189 = vadd.f32 %v112, %v177
    %v190 = vadd.f32 %v113, %v178
    %v191 = vadd.f32 %v114, %v179
    %v192 = vadd.f32 %v115, %v180
    %v193 = vadd.f32 %v116, %v181
    %v194 = vadd.f32 %v117, %v182
    %v195 = vadd.f32 %v118, %v183
    %v196 = vadd.f32 %v119, %v184
    %v197 = vadd.f32 %v120, %v185
    %v198 = vadd.f32 %v121, %v186
    %v199 = vadd.f32 %v122, %v187
    %v200 = vld [vmem:[%s2] sm:$0x1]
    %v202 = vlaneseq
    %v203 = vshrl.u32 %v202, 7
    %v204 = vsub.s32 0, %v203
    %v205 = vrot.slane %v200, %v204
    %v207 = vadd.f32 %v188, %v205
    %v208 = vadd.f32 %v189, %v205
    %v209 = vadd.f32 %v190, %v205
    %v210 = vadd.f32 %v191, %v205
    %v211 = vadd.f32 %v192, %v205
    %v212 = vadd.f32 %v193, %v205
    %v213 = vadd.f32 %v194, %v205
    %v214 = vadd.f32 %v195, %v205
    %v215 = vadd.f32 %v196, %v205
    %v216 = vadd.f32 %v197, %v205
    %v217 = vadd.f32 %v198, %v205
    %v218 = vadd.f32 %v199, %v205
    %v219 = vmax.f32 %v207, 0.0
    %v220 = vmax.f32 %v208, 0.0
    %v221 = vmax.f32 %v209, 0.0
    %v222 = vmax.f32 %v210, 0.0
    %v223 = vmax.f32 %v211, 0.0
    %v224 = vmax.f32 %v212, 0.0
    %v225 = vmax.f32 %v213, 0.0
    %v226 = vmax.f32 %v214, 0.0
    %v227 = vmax.f32 %v215, 0.0
    %v228 = vmax.f32 %v216, 0.0
    %v229 = vmax.f32 %v217, 0.0
    %v230 = vmax.f32 %v218, 0.0
    %v231 = vld [vmem:[#allocation2] sm:$0xff]
    %v232 = vld [vmem:[#allocation2 + $0x8] sm:$0xff]
    %v233 = vld [vmem:[#allocation2 + $0x10] sm:$0xff]
    %v234 = vld [vmem:[#allocation2 + $0x18] sm:$0xff]
    %v235 = vld [vmem:[#allocation2 + $0x20] sm:$0xff]
    %v236 = vld [vmem:[#allocation2 + $0x28] sm:$0xff]
    %v237 = vld [vmem:[#allocation2 + $0x30] sm:$0xff]
    %v238 = vld [vmem:[#allocation2 + $0x38] sm:$0xff]
    %v239 = vld [vmem:[#allocation2 + $0x40] sm:$0xff]
    %v240 = vld [vmem:[#allocation2 + $0x48] sm:$0xff]
    %v241 = vld [vmem:[#allocation2 + $0x50] sm:$0xff]
    %v242 = vld [vmem:[#allocation2 + $0x58] sm:$0xff]
    %v243 = vld [vmem:[#allocation2 + $0x60] sm:$0xff]
    %v244 = vld [vmem:[#allocation2 + $0x68] sm:$0xff]
    %v245 = vld [vmem:[#allocation2 + $0x70] sm:$0xff]
    %v246 = vld [vmem:[#allocation2 + $0x78] sm:$0xff]
    %v247 = vld [vmem:[%s4] sm:$0x1]
    %v249 = vlaneseq
    %v250 = vshrl.u32 %v249, 7
    %v251 = vsub.s32 0, %v250
    %v252 = vrot.slane %v247, %v251
    %254 = vmatprep.subr.mxu0 0.0
    %255 = vmatpush1.msra.mxu0 %v231
    %256 = vmatprep.subr.mxu0 0.0
    %257 = vmatpush1.msra.mxu0 %v232
    %258 = vmatprep.subr.mxu0 0.0
    %259 = vmatpush1.msra.mxu0 %v233
    %260 = vmatprep.subr.mxu0 0.0
    %261 = vmatpush1.msra.mxu0 %v234
    %262 = vmatprep.subr.mxu0 0.0
    %263 = vmatpush1.msra.mxu0 %v235
    %264 = vmatprep.subr.mxu0 0.0
    %265 = vmatpush1.msra.mxu0 %v236
    %266 = vmatprep.subr.mxu0 0.0
    %267 = vmatpush1.msra.mxu0 %v237
    %268 = vmatprep.subr.mxu0 0.0
    %269 = vmatpush1.msra.mxu0 %v238
    %270 = vmatprep.subr.mxu0 0.0
    %271 = vmatpush1.msra.mxu0 %v239
    %272 = vmatprep.subr.mxu0 0.0
    %273 = vmatpush1.msra.mxu0 %v240
    %274 = vmatprep.subr.mxu0 0.0
    %275 = vmatpush1.msra.mxu0 %v241
    %276 = vmatprep.subr.mxu0 0.0
    %277 = vmatpush1.msra.mxu0 %v242
    %278 = vmatprep.subr.mxu0 0.0
    %279 = vmatpush1.msra.mxu0 %v243
    %280 = vmatprep.subr.mxu0 0.0
    %281 = vmatpush1.msra.mxu0 %v244
    %282 = vmatprep.subr.mxu0 0.0
    %283 = vmatpush1.msra.mxu0 %v245
    %284 = vmatprep.subr.mxu0 0.0
    %285 = vmatpush1.msra.mxu0 %v246
    %286 = vmatprep.subr.mxu0 0.0
    %287 = vmatpush1.msra.mxu0 0.0
    %288 = vmatprep.subr.mxu0 0.0
    %289 = vmatpush1.msra.mxu0 0.0
    %290 = vmatprep.subr.mxu0 0.0
    %291 = vmatpush1.msra.mxu0 0.0
    %292 = vmatprep.subr.mxu0 0.0
    %293 = vmatpush1.msra.mxu0 0.0
    %294 = vmatprep.subr.mxu0 0.0
    %295 = vmatpush1.msra.mxu0 0.0
    %296 = vmatprep.subr.mxu0 0.0
    %297 = vmatpush1.msra.mxu0 0.0
    %298 = vmatprep.subr.mxu0 0.0
    %299 = vmatpush1.msra.mxu0 0.0
    %300 = vmatprep.subr.mxu0 0.0
    %301 = vmatpush1.msra.mxu0 0.0
    %302 = vmatprep.subr.mxu0 0.0
    %303 = vmatpush1.msra.mxu0 0.0
    %304 = vmatprep.subr.mxu0 0.0
    %305 = vmatpush1.msra.mxu0 0.0
    %306 = vmatprep.subr.mxu0 0.0
    %307 = vmatpush1.msra.mxu0 0.0
    %308 = vmatprep.subr.mxu0 0.0
    %309 = vmatpush1.msra.mxu0 0.0
    %310 = vmatprep.subr.mxu0 0.0
    %311 = vmatpush1.msra.mxu0 0.0
    %312 = vmatprep.subr.mxu0 0.0
    %313 = vmatpush1.msra.mxu0 0.0
    %314 = vmatprep.subr.mxu0 0.0
    %315 = vmatpush1.msra.mxu0 0.0
    %316 = vmatprep.subr.mxu0 0.0
    %317 = vmatpush1.msra.mxu0 0.0
    %318 = vmatprep.mubr.f32.mxu0 0.0
    %319 = vmatmul.mubr.f32.gmra.mrb[0].mxu0 %v219
    %v320 = vpop.f32.mrb[0].mxu0
    %v321 = vadd.f32 %v252, %v320
    %v322 = vpop.f32.mrb[0].mxu0
    %323 = vmatprep.mubr.f32.mxu0 0.0
    %324 = vmatmul.mubr.f32.gmra.mrb[0].mxu0 %v220
    %v325 = vpop.f32.mrb[0].mxu0
    %v326 = vadd.f32 %v252, %v325
    %v327 = vpop.f32.mrb[0].mxu0
    %328 = vmatprep.mubr.f32.mxu0 0.0
    %329 = vmatmul.mubr.f32.gmra.mrb[0].mxu0 %v221
    %v330 = vpop.f32.mrb[0].mxu0
    %v331 = vadd.f32 %v252, %v330
    %v332 = vpop.f32.mrb[0].mxu0
    %333 = vmatprep.mubr.f32.mxu0 0.0
    %334 = vmatmul.mubr.f32.gmra.mrb[0].mxu0 %v222
    %v335 = vpop.f32.mrb[0].mxu0
    %v336 = vadd.f32 %v252, %v335
    %v337 = vpop.f32.mrb[0].mxu0
    %338 = vmatprep.mubr.f32.mxu0 0.0
    %339 = vmatmul.mubr.f32.gmra.mrb[0].mxu0 %v223
    %v340 = vpop.f32.mrb[0].mxu0
    %v341 = vadd.f32 %v252, %v340
    %v342 = vpop.f32.mrb[0].mxu0
    %343 = vmatprep.mubr.f32.mxu0 0.0
    %344 = vmatmul.mubr.f32.gmra.mrb[0].mxu0 %v224
    %v345 = vpop.f32.mrb[0].mxu0
    %v346 = vadd.f32 %v252, %v345
    %v347 = vpop.f32.mrb[0].mxu0
    %348 = vmatprep.mubr.f32.mxu0 0.0
    %349 = vmatmul.mubr.f32.gmra.mrb[0].mxu0 %v225
    %v350 = vpop.f32.mrb[0].mxu0
    %v351 = vadd.f32 %v252, %v350
    %v352 = vpop.f32.mrb[0].mxu0
    %353 = vmatprep.mubr.f32.mxu0 0.0
    %354 = vmatmul.mubr.f32.gmra.mrb[0].mxu0 %v226
    %v355 = vpop.f32.mrb[0].mxu0
    %v356 = vadd.f32 %v252, %v355
    %v357 = vpop.f32.mrb[0].mxu0
    %358 = vmatprep.mubr.f32.mxu0 0.0
    %359 = vmatmul.mubr.f32.gmra.mrb[0].mxu0 %v227
    %v360 = vpop.f32.mrb[0].mxu0
    %v361 = vadd.f32 %v252, %v360
    %v362 = vpop.f32.mrb[0].mxu0
    %363 = vmatprep.mubr.f32.mxu0 0.0
    %364 = vmatmul.mubr.f32.gmra.mrb[0].mxu0 %v228
    %v365 = vpop.f32.mrb[0].mxu0
    %v366 = vadd.f32 %v252, %v365
    %v367 = vpop.f32.mrb[0].mxu0
    %368 = vmatprep.mubr.f32.mxu0 0.0
    %369 = vmatmul.mubr.f32.gmra.mrb[0].mxu0 %v229
    %v370 = vpop.f32.mrb[0].mxu0
    %v371 = vadd.f32 %v252, %v370
    %v372 = vpop.f32.mrb[0].mxu0
    %373 = vmatprep.mubr.f32.mxu0 0.0
    %374 = vmatmul.mubr.f32.gmra.mrb[0].mxu0 %v230
    %v375 = vpop.f32.mrb[0].mxu0
    %v376 = vadd.f32 %v252, %v375
    %v377 = vpop.f32.mrb[0].mxu0
    %378 = vdwg.mxu0
    %379 = vst [vmem:[%s5] sm:$0xff] %v321
    %380 = vst [vmem:[%s5 + $0x8] sm:$0xff] %v326
    %381 = vst [vmem:[%s5 + $0x10] sm:$0xff] %v331
    %382 = vst [vmem:[%s5 + $0x18] sm:$0xff] %v336
    %383 = vst [vmem:[%s5 + $0x20] sm:$0xff] %v341
    %384 = vst [vmem:[%s5 + $0x28] sm:$0xff] %v346
    %385 = vst [vmem:[%s5 + $0x30] sm:$0xff] %v351
    %386 = vst [vmem:[%s5 + $0x38] sm:$0xff] %v356
    %387 = vst [vmem:[%s5 + $0x40] sm:$0xff] %v361
    %388 = vst [vmem:[%s5 + $0x48] sm:$0xff] %v366
    %389 = vst [vmem:[%s5 + $0x50] sm:$0xff] %v371
    %390 = vst [vmem:[%s5 + $0x58] sm:$0x3] %v376
    // Predicated region
    $region26: #{mlp_forward.1} parent=1 // pred_check
      _
    $region27: #{mlp_forward.1} parent=1 // pred_check_branch
      %392 = sbr.rel (0) target = $region29
    $region28: #{mlp_forward.1} parent=1 // pred_region
      _
    $region29: #{mlp_forward.1} parent=1 // pred_fallthru
      _
    // Predicated region
    $region30: #{mlp_forward.1} parent=1 // pred_check
      _
    $region31: #{mlp_forward.1} parent=1 // pred_check_branch
      %394 = sbr.rel (0) target = $region33
    $region32: #{mlp_forward.1} parent=1 // pred_region
      _
    $region33: #{mlp_forward.1} parent=1 // pred_fallthru
      _
    %395 = vsyncpa [#allocation3], 1

</llo_original>
